<compile_context>
chip_gen: v7x
topology: tpu7x:2x2x1
jax: 0.10.0
libtpu: 0.0.40
codegen_flags: <defaults>
</compile_context>

<pallas_src>
import jax
import jax.numpy as jnp
from jax import lax
from jax.experimental import pallas as pl
from jax.experimental.pallas import tpu as pltpu

BN_EPS = 1e-5


def _round_up(x, m):
    return (x + m - 1) // m * m


def ncf_kernel(ids_ref, utab_ref, itab_ref, b1_ref, w2_ref, b2_ref,
               fcw_mlp_ref, fcb_ref, out_ref):
    """One batch tile: fused gather (one-hot MXU matmul against pre-fused tables)
    + MLP layer 2 + GMF + final FC + sigmoid."""
    tb = ids_ref.shape[0]
    nu = utab_ref.shape[0]
    ni = itab_ref.shape[0]
    h1 = w2_ref.shape[0]

    u_id = ids_ref[:, 0:1]                                   # (tb, 1) int32
    i_id = ids_ref[:, 1:2]                                   # (tb, 1) int32

    # One-hot row gather on the MXU (tables are tiny and fully VMEM-resident).
    oh_u = (u_id == lax.broadcasted_iota(jnp.int32, (tb, nu), 1)).astype(utab_ref.dtype)
    oh_i = (i_id == lax.broadcasted_iota(jnp.int32, (tb, ni), 1)).astype(itab_ref.dtype)

    # Fused gather: cols [0:H1] = emb_mlp @ W1' (BN1 folded),
    #               cols [H1:H1+E] = MF embedding (user side pre-scaled by fc_w_mf).
    ug = jnp.dot(oh_u, utab_ref[...], preferred_element_type=jnp.float32)  # (tb, H1+E)
    ig = jnp.dot(oh_i, itab_ref[...], preferred_element_type=jnp.float32)  # (tb, H1+E)

    # MLP layer 1 (weights already applied inside the tables) + ReLU.
    h = jnp.maximum(ug[:, :h1] + ig[:, :h1] + b1_ref[...], 0.0)            # (tb, H1) f32

    # MLP layer 2 (BN folded), f32 MXU accumulation, + ReLU.
    h = jnp.dot(h.astype(w2_ref.dtype), w2_ref[...],
                preferred_element_type=jnp.float32) + b2_ref[...]
    h = jnp.maximum(h, 0.0)                                                # (tb, H2) f32

    # GMF path (f32 VPU); final-FC MF weights were folded into the user table.
    mf = ug[:, h1:] * ig[:, h1:]                                           # (tb, E) f32

    # Final FC as VPU multiply + lane (XLU) reductions; MXU stays free.
    logit = (jnp.sum(mf, axis=-1, keepdims=True)
             + jnp.sum(h * fcw_mlp_ref[...], axis=-1, keepdims=True)
             + fcb_ref[...])
    out_ref[...] = jax.nn.sigmoid(logit)


def ncf_pallas(user_item, params, *, compute_dtype=jnp.bfloat16, tile_b=4096):
    B = user_item.shape[0]
    E = params["emb_user_mlp"].shape[1]
    hp = jax.lax.Precision.HIGHEST

    # ---- Fold eval-mode BatchNorm into the linear weights / biases.
    s1 = params["bn1_gamma"] * jax.lax.rsqrt(params["bn1_var"] + BN_EPS)    # (H1,)
    w1 = params["mlp_w1"] * s1[:, None]                                     # (H1, 2E)
    b1 = (params["mlp_b1"] - params["bn1_mean"]) * s1 + params["bn1_beta"]  # (H1,)
    s2 = params["bn2_gamma"] * jax.lax.rsqrt(params["bn2_var"] + BN_EPS)
    w2 = params["mlp_w2"] * s2[:, None]                                     # (H2, H1)
    b2 = (params["mlp_b2"] - params["bn2_mean"]) * s2 + params["bn2_beta"]

    # ---- Fuse embedding tables with the MLP layer-1 weight halves and fold the
    #      final-FC MF weights into the user MF table.  The in-kernel one-hot
    #      matmul then performs gather + layer-1 partial in one MXU pass.
    #      Tables stay f32 (read once; keeps the GMF path f32-accurate).
    fcw = params["fc_w"]                                                    # (1, E+H2)
    u_tab = jnp.concatenate([
        jnp.dot(params["emb_user_mlp"], w1[:, :E].T, precision=hp),         # (NU, H1)
        params["emb_user_mf"] * fcw[:, :E],                                  # (NU, E)
    ], axis=1).astype(jnp.float32)
    i_tab = jnp.concatenate([
        jnp.dot(params["emb_item_mlp"], w1[:, E:].T, precision=hp),         # (NI, H1)
        params["emb_item_mf"],                                               # (NI, E)
    ], axis=1).astype(jnp.float32)

    b1r = b1[None, :].astype(jnp.float32)            # (1, H1)
    w2t = w2.T.astype(compute_dtype)                 # (H1, H2)
    b2r = b2[None, :].astype(jnp.float32)            # (1, H2)
    fcw_mlp = fcw[:, E:].astype(jnp.float32)         # (1, H2)
    fcb = params["fc_b"][None, :].astype(jnp.float32)  # (1, 1)

    # ---- Batch tiling: only 8 B/row of ids are DMA'd per tile.  Balance tiles
    #      so the last one is not mostly padding; when B allows, keep >= 2 grid
    #      steps so the "parallel" axis shards across both v7x TensorCores.
    tb = max(8, min(tile_b, _round_up(B, 8)))
    if B > tb:
        n_tiles = pl.cdiv(B, tb)
        tb = _round_up(pl.cdiv(B, n_tiles), 8)
    elif B >= 16:
        tb = _round_up(pl.cdiv(B, 2), 8)
    b_pad = _round_up(B, tb)

    ids = user_item.astype(jnp.int32)
    if b_pad != B:
        ids = jnp.pad(ids, ((0, b_pad - B), (0, 0)))   # pad ids, not activations

    consts = [u_tab, i_tab, b1r, w2t, b2r, fcw_mlp, fcb]
    in_specs = ([pl.BlockSpec((tb, 2), lambda i: (i, 0))]
                + [pl.BlockSpec(c.shape, lambda i: (0, 0)) for c in consts])

    out = pl.pallas_call(
        ncf_kernel,
        out_shape=jax.ShapeDtypeStruct((b_pad, 1), jnp.float32),
        grid=(b_pad // tb,),
        in_specs=in_specs,
        out_specs=pl.BlockSpec((tb, 1), lambda i: (i, 0)),
        compiler_params=pltpu.CompilerParams(
            dimension_semantics=("parallel",)),
    )(ids, *consts)
    return out[:B, 0]


def ncf_reference(user_item, params):
    """Pure-JAX f32 reference mirroring the PyTorch forward (eval mode)."""
    hp = jax.lax.Precision.HIGHEST
    user = user_item[:, 0]
    item = user_item[:, 1]
    u_mlp = params["emb_user_mlp"][user]
    i_mlp = params["emb_item_mlp"][item]
    u_mf = params["emb_user_mf"][user]
    i_mf = params["emb_item_mf"][item]

    mlp_vec = jnp.concatenate([u_mlp, i_mlp], axis=-1)
    h = jnp.dot(mlp_vec, params["mlp_w1"].T, precision=hp) + params["mlp_b1"]
    h = (h - params["bn1_mean"]) / jnp.sqrt(params["bn1_var"] + BN_EPS) \
        * params["bn1_gamma"] + params["bn1_beta"]
    h = jnp.maximum(h, 0.0)
    h = jnp.dot(h, params["mlp_w2"].T, precision=hp) + params["mlp_b2"]
    h = (h - params["bn2_mean"]) / jnp.sqrt(params["bn2_var"] + BN_EPS) \
        * params["bn2_gamma"] + params["bn2_beta"]
    h = jnp.maximum(h, 0.0)

    mf = u_mf * i_mf
    x = jnp.concatenate([mf, h], axis=1)
    logit = jnp.dot(x, params["fc_w"].T, precision=hp) + params["fc_b"]
    return jax.nn.sigmoid(logit[:, 0])


def init_params(key, num_users, num_items, embed_dim, mlp_dims):
    def xavier(k, shape):
        lim = (6.0 / (shape[0] + shape[1])) ** 0.5
        return jax.random.uniform(k, shape, jnp.float32, -lim, lim)

    H1, H2 = mlp_dims
    ks = jax.random.split(key, 8)
    return {
        "emb_user_mlp": xavier(ks[0], (num_users, embed_dim)),
        "emb_item_mlp": xavier(ks[1], (num_items, embed_dim)),
        "emb_user_mf":  xavier(ks[2], (num_users, embed_dim)),
        "emb_item_mf":  xavier(ks[3], (num_items, embed_dim)),
        "mlp_w1": xavier(ks[4], (H1, 2 * embed_dim)),
        "mlp_b1": jnp.zeros((H1,), jnp.float32),
        "mlp_w2": xavier(ks[5], (H2, H1)),
        "mlp_b2": jnp.zeros((H2,), jnp.float32),
        "bn1_gamma": jnp.ones((H1,), jnp.float32),
        "bn1_beta":  jnp.zeros((H1,), jnp.float32),
        "bn1_mean":  jnp.zeros((H1,), jnp.float32),
        "bn1_var":   jnp.ones((H1,), jnp.float32),
        "bn2_gamma": jnp.ones((H2,), jnp.float32),
        "bn2_beta":  jnp.zeros((H2,), jnp.float32),
        "bn2_mean":  jnp.zeros((H2,), jnp.float32),
        "bn2_var":   jnp.ones((H2,), jnp.float32),
        "fc_w": xavier(ks[6], (1, embed_dim + H2)),
        "fc_b": jnp.zeros((1,), jnp.float32),
    }


if __name__ == "__main__":
    num_users, num_items = 20, 30          # ui_field_dims = (20, 30)
    embed_dim = 16
    mlp_dims = (32, 16)

    key = jax.random.PRNGKey(0)
    k_param, k_small, k_big = jax.random.split(key, 3)
    params = init_params(k_param, num_users, num_items, embed_dim, mlp_dims)

    def make_batch(kb, B):
        ku, ki = jax.random.split(kb)
        users = jax.random.randint(ku, (B,), 0, num_users, dtype=jnp.int32)
        items = jax.random.randint(ki, (B,), 0, num_items, dtype=jnp.int32)
        return jnp.stack([users, items], axis=1)   # (B, 2) int32

    # 1) Small batch, f32 compute: checks the fused structure (BN folding,
    #    table||W1 fusion, one-hot gather, fc_w folding) at tight tolerance.
    ui_small = make_batch(k_small, 8)
    out_f32 = jax.block_until_ready(
        ncf_pallas(ui_small, params, compute_dtype=jnp.float32))
    ref_small = jax.block_until_ready(ncf_reference(ui_small, params))
    assert out_f32.shape == (8,)
    assert jnp.allclose(out_f32, ref_small, atol=1e-4, rtol=1e-4), (out_f32, ref_small)

    # 2) Larger batch (2 balanced grid tiles + 8 padded id rows), default bf16
    #    layer-2 weight, f32 tables / accumulation.
    ui_big = make_batch(k_big, 600)
    out_bf16 = jax.block_until_ready(ncf_pallas(ui_big, params))
    ref_big = jax.block_until_ready(ncf_reference(ui_big, params))
    assert out_bf16.shape == (600,)
    assert jnp.allclose(out_bf16, ref_big, atol=2e-2, rtol=0.0), (out_bf16, ref_big)

    print("KERNEL_OK")
</pallas_src>

<mosaic_0001>
module attributes {stable_mosaic.version = 11 : i64} {
  func.func @ncf_kernel(%arg0: i32, %arg1: memref<8x2xi32, #tpu.memory_space<vmem>>, %arg2: memref<20x48xf32, #tpu.memory_space<vmem>>, %arg3: memref<30x48xf32, #tpu.memory_space<vmem>>, %arg4: memref<1x32xf32, #tpu.memory_space<vmem>>, %arg5: memref<32x16xf32, #tpu.memory_space<vmem>>, %arg6: memref<1x16xf32, #tpu.memory_space<vmem>>, %arg7: memref<1x16xf32, #tpu.memory_space<vmem>>, %arg8: memref<1x1xf32, #tpu.memory_space<vmem>>, %arg9: memref<8x1xf32, #tpu.memory_space<vmem>>) attributes {dimension_semantics = [#tpu.dimension_semantics<parallel>], iteration_bounds = array<i64: 1>, scalar_prefetch = 0 : i64, scratch_operands = 0 : i64, tpu.core_type = #tpu.core_type<tc>, window_params = [{transform_indices = @transform_0, window_bounds = array<i64: 8, 2>}, {pipeline_mode = #tpu.pipeline_mode<synchronous>, transform_indices = @transform_1, window_bounds = array<i64: 20, 48>}, {pipeline_mode = #tpu.pipeline_mode<synchronous>, transform_indices = @transform_2, window_bounds = array<i64: 30, 48>}, {pipeline_mode = #tpu.pipeline_mode<synchronous>, transform_indices = @transform_3, window_bounds = array<i64: 1, 32>}, {pipeline_mode = #tpu.pipeline_mode<synchronous>, transform_indices = @transform_4, window_bounds = array<i64: 32, 16>}, {pipeline_mode = #tpu.pipeline_mode<synchronous>, transform_indices = @transform_5, window_bounds = array<i64: 1, 16>}, {pipeline_mode = #tpu.pipeline_mode<synchronous>, transform_indices = @transform_6, window_bounds = array<i64: 1, 16>}, {pipeline_mode = #tpu.pipeline_mode<synchronous>, transform_indices = @transform_7, window_bounds = array<i64: 1, 1>}, {transform_indices = @transform_8, window_bounds = array<i64: 8, 1>}]} {
    %c0 = arith.constant 0 : index
    %c0_0 = arith.constant 0 : index
    %0 = vector.load %arg1[%c0, %c0_0] : memref<8x2xi32, #tpu.memory_space<vmem>>, vector<8x1xi32>
    %c0_1 = arith.constant 0 : index
    %c1 = arith.constant 1 : index
    %1 = vector.load %arg1[%c0_1, %c1] : memref<8x2xi32, #tpu.memory_space<vmem>>, vector<8x1xi32>
    %2 = tpu.iota {dimensions = array<i32: 1>} : vector<8x20xi32>
    %3 = vector.broadcast %0 : vector<8x1xi32> to vector<8x20xi32>
    %4 = arith.cmpi eq, %3, %2 : vector<8x20xi32>
    %5 = arith.extui %4 : vector<8x20xi1> to vector<8x20xi32>
    %6 = arith.sitofp %5 : vector<8x20xi32> to vector<8x20xf32>
    %7 = tpu.iota {dimensions = array<i32: 1>} : vector<8x30xi32>
    %8 = vector.broadcast %1 : vector<8x1xi32> to vector<8x30xi32>
    %9 = arith.cmpi eq, %8, %7 : vector<8x30xi32>
    %10 = arith.extui %9 : vector<8x30xi1> to vector<8x30xi32>
    %11 = arith.sitofp %10 : vector<8x30xi32> to vector<8x30xf32>
    %c0_2 = arith.constant 0 : index
    %c0_3 = arith.constant 0 : index
    %12 = vector.load %arg2[%c0_2, %c0_3] : memref<20x48xf32, #tpu.memory_space<vmem>>, vector<20x48xf32>
    %cst = arith.constant dense<0.000000e+00> : vector<8x48xf32>
    %13 = tpu.matmul %6, %12, %cst {dimension_numbers = #tpu.dot_dimension_numbers<[1], [0], [0], [1], [0, 0, 1, 1], [], []>} : vector<8x20xf32>, vector<20x48xf32>, vector<8x48xf32> -> vector<8x48xf32>
    %c0_4 = arith.constant 0 : index
    %c0_5 = arith.constant 0 : index
    %14 = vector.load %arg3[%c0_4, %c0_5] : memref<30x48xf32, #tpu.memory_space<vmem>>, vector<30x48xf32>
    %cst_6 = arith.constant dense<0.000000e+00> : vector<8x48xf32>
    %15 = tpu.matmul %11, %14, %cst_6 {dimension_numbers = #tpu.dot_dimension_numbers<[1], [0], [0], [1], [0, 0, 1, 1], [], []>} : vector<8x30xf32>, vector<30x48xf32>, vector<8x48xf32> -> vector<8x48xf32>
    %16 = vector.extract_strided_slice %13 {offsets = [0, 0], sizes = [8, 32], strides = [1, 1]} : vector<8x48xf32> to vector<8x32xf32>
    %17 = vector.extract_strided_slice %15 {offsets = [0, 0], sizes = [8, 32], strides = [1, 1]} : vector<8x48xf32> to vector<8x32xf32>
    %18 = arith.addf %16, %17 : vector<8x32xf32>
    %c0_7 = arith.constant 0 : index
    %c0_8 = arith.constant 0 : index
    %19 = vector.load %arg4[%c0_7, %c0_8] : memref<1x32xf32, #tpu.memory_space<vmem>>, vector<1x32xf32>
    %20 = vector.broadcast %19 : vector<1x32xf32> to vector<8x32xf32>
    %21 = arith.addf %18, %20 : vector<8x32xf32>
    %cst_9 = arith.constant 0.000000e+00 : f32
    %22 = vector.broadcast %cst_9 : f32 to vector<8x32xf32>
    %23 = arith.maximumf %21, %22 : vector<8x32xf32>
    %c0_10 = arith.constant 0 : index
    %c0_11 = arith.constant 0 : index
    %24 = vector.load %arg5[%c0_10, %c0_11] : memref<32x16xf32, #tpu.memory_space<vmem>>, vector<32x16xf32>
    %cst_12 = arith.constant dense<0.000000e+00> : vector<8x16xf32>
    %25 = tpu.matmul %23, %24, %cst_12 {dimension_numbers = #tpu.dot_dimension_numbers<[1], [0], [0], [1], [0, 0, 1, 1], [], []>} : vector<8x32xf32>, vector<32x16xf32>, vector<8x16xf32> -> vector<8x16xf32>
    %c0_13 = arith.constant 0 : index
    %c0_14 = arith.constant 0 : index
    %26 = vector.load %arg6[%c0_13, %c0_14] : memref<1x16xf32, #tpu.memory_space<vmem>>, vector<1x16xf32>
    %27 = vector.broadcast %26 : vector<1x16xf32> to vector<8x16xf32>
    %28 = arith.addf %25, %27 : vector<8x16xf32>
    %cst_15 = arith.constant 0.000000e+00 : f32
    %29 = vector.broadcast %cst_15 : f32 to vector<8x16xf32>
    %30 = arith.maximumf %28, %29 : vector<8x16xf32>
    %31 = vector.extract_strided_slice %13 {offsets = [0, 32], sizes = [8, 16], strides = [1, 1]} : vector<8x48xf32> to vector<8x16xf32>
    %32 = vector.extract_strided_slice %15 {offsets = [0, 32], sizes = [8, 16], strides = [1, 1]} : vector<8x48xf32> to vector<8x16xf32>
    %33 = arith.mulf %31, %32 : vector<8x16xf32>
    %cst_16 = arith.constant dense<0.000000e+00> : vector<8xf32>
    %34 = vector.multi_reduction <add>, %33, %cst_16 [1] : vector<8x16xf32> to vector<8xf32>
    %35 = vector.shape_cast %34 : vector<8xf32> to vector<8x1xf32>
    %c0_17 = arith.constant 0 : index
    %c0_18 = arith.constant 0 : index
    %36 = vector.load %arg7[%c0_17, %c0_18] : memref<1x16xf32, #tpu.memory_space<vmem>>, vector<1x16xf32>
    %37 = vector.broadcast %36 : vector<1x16xf32> to vector<8x16xf32>
    %38 = arith.mulf %30, %37 : vector<8x16xf32>
    %cst_19 = arith.constant dense<0.000000e+00> : vector<8xf32>
    %39 = vector.multi_reduction <add>, %38, %cst_19 [1] : vector<8x16xf32> to vector<8xf32>
    %40 = vector.shape_cast %39 : vector<8xf32> to vector<8x1xf32>
    %41 = arith.addf %35, %40 : vector<8x1xf32>
    %c0_20 = arith.constant 0 : index
    %c0_21 = arith.constant 0 : index
    %42 = vector.load %arg8[%c0_20, %c0_21] : memref<1x1xf32, #tpu.memory_space<vmem>>, vector<1x1xf32>
    %43 = vector.broadcast %42 : vector<1x1xf32> to vector<8x1xf32>
    %44 = arith.addf %41, %43 : vector<8x1xf32>
    %45 = arith.negf %44 : vector<8x1xf32>
    %46 = math.exp %45 : vector<8x1xf32>
    %cst_22 = arith.constant 1.000000e+00 : f32
    %47 = vector.broadcast %cst_22 : f32 to vector<8x1xf32>
    %48 = arith.addf %47, %46 : vector<8x1xf32>
    %49 = arith.divf %47, %48 : vector<8x1xf32>
    %c0_23 = arith.constant 0 : index
    %c0_24 = arith.constant 0 : index
    %50 = vector.load %arg9[%c0_23, %c0_24] : memref<8x1xf32, #tpu.memory_space<vmem>>, vector<8x1xf32>
    tpu.vector_store %arg9[%c0_23, %c0_24], %49 {strides = array<i32>} : memref<8x1xf32, #tpu.memory_space<vmem>>, vector<8x1xf32>,
    return
  }
  func.func @transform_0(%arg0: i32) -> (i32, i32) {
    %c0_i32 = arith.constant 0 : i32
    %c0_i32_0 = arith.constant 0 : i32
    return %arg0, %c0_i32 : i32, i32
  }
  func.func @transform_1(%arg0: i32) -> (i32, i32) {
    %c0_i32 = arith.constant 0 : i32
    %c0_i32_0 = arith.constant 0 : i32
    %c0_i32_1 = arith.constant 0 : i32
    return %c0_i32, %c0_i32_0 : i32, i32
  }
  func.func @transform_2(%arg0: i32) -> (i32, i32) {
    %c0_i32 = arith.constant 0 : i32
    %c0_i32_0 = arith.constant 0 : i32
    %c0_i32_1 = arith.constant 0 : i32
    return %c0_i32, %c0_i32_0 : i32, i32
  }
  func.func @transform_3(%arg0: i32) -> (i32, i32) {
    %c0_i32 = arith.constant 0 : i32
    %c0_i32_0 = arith.constant 0 : i32
    %c0_i32_1 = arith.constant 0 : i32
    return %c0_i32, %c0_i32_0 : i32, i32
  }
  func.func @transform_4(%arg0: i32) -> (i32, i32) {
    %c0_i32 = arith.constant 0 : i32
    %c0_i32_0 = arith.constant 0 : i32
    %c0_i32_1 = arith.constant 0 : i32
    return %c0_i32, %c0_i32_0 : i32, i32
  }
  func.func @transform_5(%arg0: i32) -> (i32, i32) {
    %c0_i32 = arith.constant 0 : i32
    %c0_i32_0 = arith.constant 0 : i32
    %c0_i32_1 = arith.constant 0 : i32
    return %c0_i32, %c0_i32_0 : i32, i32
  }
  func.func @transform_6(%arg0: i32) -> (i32, i32) {
    %c0_i32 = arith.constant 0 : i32
    %c0_i32_0 = arith.constant 0 : i32
    %c0_i32_1 = arith.constant 0 : i32
    return %c0_i32, %c0_i32_0 : i32, i32
  }
  func.func @transform_7(%arg0: i32) -> (i32, i32) {
    %c0_i32 = arith.constant 0 : i32
    %c0_i32_0 = arith.constant 0 : i32
    %c0_i32_1 = arith.constant 0 : i32
    return %c0_i32, %c0_i32_0 : i32, i32
  }
  func.func @transform_8(%arg0: i32) -> (i32, i32) {
    %c0_i32 = arith.constant 0 : i32
    %c0_i32_0 = arith.constant 0 : i32
    return %arg0, %c0_i32 : i32, i32
  }
}

</mosaic_0001>

<llo_original>
// kernel: tpu_custom_call.1
$region0: #{tpu_custom_call.1}
  #allocation0 [shape = 'u32[]', space=smem, size = 0x4, offset = 0x4, fixed_abs, tag = 'smem constant byte address 0x4 - core index']
  #allocation1 [shape = 'u32[144,128]{1,0:T(1,128)}', space=vmem, size = 0x12000, scoped, tag = 'internal scratch']
  #allocation2 [shape = 'f32[1,1]{1,0:T(1,128)S(1)}', space=vmem, size = 0x200, scoped, tag = 'scoped memory for tpu_custom_call.1']
  %s0 = inlined_call_operand.vmem [shape: s32[8,2], index: 0, kind: input, shape index: {}]
  %s1 = inlined_call_operand.vmem [shape: f32[20,48], index: 1, kind: input, shape index: {}]
  %s2 = inlined_call_operand.vmem [shape: f32[30,48], index: 2, kind: input, shape index: {}]
  %s3 = inlined_call_operand.vmem [shape: f32[1,32], index: 3, kind: input, shape index: {}]
  %s4 = inlined_call_operand.vmem [shape: f32[32,16], index: 4, kind: input, shape index: {}]
  %s5 = inlined_call_operand.vmem [shape: f32[1,16], index: 5, kind: input, shape index: {}]
  %s6 = inlined_call_operand.vmem [shape: f32[1,16], index: 6, kind: input, shape index: {}]
  %s7 = inlined_call_operand.<no memory space> [shape: f32[1,1], index: 7, kind: input, shape index: {}]
  %s8 = inlined_call_operand.vmem [shape: f32[8,1], index: 8, kind: output, shape index: {}]
  %s9 = sld [smem:[#allocation0]]
  $region42: #{tpu_custom_call.1} parent=0
    _
  %s11 = ssub.s32 1, %s9
  %s12 = scalar_select 0, %s11, %s9
  %v13 = vstv %s7
  %14 = vst [vmem:[#allocation2] sm:$0x1] %v13
  // Predicated region
  $region2: #{tpu_custom_call.1} parent=0 // pred_check
    _
  $region3: #{tpu_custom_call.1} parent=0 // pred_check_branch
    %16 = sbr.rel (0) target = $region5
  $region4: #{tpu_custom_call.1} parent=0 // pred_region
    _
  $region5: #{tpu_custom_call.1} parent=0 // pred_fallthru
    _
  // Predicated region
  $region6: #{tpu_custom_call.1} parent=0 // pred_check
    _
  $region7: #{tpu_custom_call.1} parent=0 // pred_check_branch
    %18 = sbr.rel (0) target = $region9
  $region8: #{tpu_custom_call.1} parent=0 // pred_region
    _
  $region9: #{tpu_custom_call.1} parent=0 // pred_fallthru
    _
  // Predicated region
  $region10: #{tpu_custom_call.1} parent=0 // pred_check
    _
  $region11: #{tpu_custom_call.1} parent=0 // pred_check_branch
    %20 = sbr.rel (0) target = $region13
  $region12: #{tpu_custom_call.1} parent=0 // pred_region
    _
  $region13: #{tpu_custom_call.1} parent=0 // pred_fallthru
    _
  // Predicated region
  $region14: #{tpu_custom_call.1} parent=0 // pred_check
    _
  $region15: #{tpu_custom_call.1} parent=0 // pred_check_branch
    %22 = sbr.rel (0) target = $region17
  $region16: #{tpu_custom_call.1} parent=0 // pred_region
    _
  $region17: #{tpu_custom_call.1} parent=0 // pred_fallthru
    _
  // Predicated region
  $region18: #{tpu_custom_call.1} parent=0 // pred_check
    _
  $region19: #{tpu_custom_call.1} parent=0 // pred_check_branch
    %24 = sbr.rel (0) target = $region21
  $region20: #{tpu_custom_call.1} parent=0 // pred_region
    _
  $region21: #{tpu_custom_call.1} parent=0 // pred_fallthru
    _
  // Predicated region
  $region22: #{tpu_custom_call.1} parent=0 // pred_check
    _
  $region23: #{tpu_custom_call.1} parent=0 // pred_check_branch
    %26 = sbr.rel (0) target = $region25
  $region24: #{tpu_custom_call.1} parent=0 // pred_region
    _
  $region25: #{tpu_custom_call.1} parent=0 // pred_fallthru
    _
  // Predicated region
  $region26: #{tpu_custom_call.1} parent=0 // pred_check
    _
  $region27: #{tpu_custom_call.1} parent=0 // pred_check_branch
    %28 = sbr.rel (0) target = $region29
  $region28: #{tpu_custom_call.1} parent=0 // pred_region
    _
  $region29: #{tpu_custom_call.1} parent=0 // pred_fallthru
    _
  // Predicated region
  $region30: #{tpu_custom_call.1} parent=0 // pred_check
    _
  $region31: #{tpu_custom_call.1} parent=0 // pred_check_branch
    %30 = sbr.rel (0) target = $region33
  $region32: #{tpu_custom_call.1} parent=0 // pred_region
    _
  $region33: #{tpu_custom_call.1} parent=0 // pred_fallthru
    _
  %v31 = vld [vmem:[%s0] sm:$0xff]
  %v32 = vlaneseq
  %v33 = vand.u32 %v32, 127
  %34 = vset.pattern.permute.xlu0 0
  %35 = vperm.xlu0 %34, %v31
  %v36 = vpop.permute.xlu0 %35
  %vm37 = vcmp.eq.s32.totalorder %v36, %v33
  %v38 = vsel %vm37, 1, 0
  %v39 = vcvt.s32.f32 %v38
  %40 = vset.pattern.permute.xlu0 1
  %41 = vperm.xlu0 %40, %v31
  %v42 = vpop.permute.xlu0 %41
  %vm43 = vcmp.eq.s32.totalorder %v42, %v33
  %v44 = vsel %vm43, 1, 0
  %v45 = vcvt.s32.f32 %v44
  %v46 = vld [vmem:[%s1] sm:$0xff]
  %v47 = vld [vmem:[%s1 + $0x8] sm:$0xff]
  %v48 = vld [vmem:[%s1 + $0x10] sm:$0xf]
  %vm49 = vcmask 162816
  %v51 = vsel %vm49, %v39, 0
  %vm53 = vcmask 1043456
  %v55 = vsel %vm53, %v48, 0
  %57 = vmatprep.subr.mxu0 0.0
  %58 = vmatpush1.msra.mxu0 %v46
  %59 = vmatprep.subr.mxu0 0.0
  %60 = vmatpush1.msra.mxu0 %v47
  %61 = vmatprep.subr.mxu0 0.0
  %62 = vmatpush1.msra.mxu0 %v55
  %63 = vmatprep.subr.mxu0 0.0
  %64 = vmatpush1.msra.mxu0 0.0
  %65 = vmatprep.subr.mxu0 0.0
  %66 = vmatpush1.msra.mxu0 0.0
  %67 = vmatprep.subr.mxu0 0.0
  %68 = vmatpush1.msra.mxu0 0.0
  %69 = vmatprep.subr.mxu0 0.0
  %70 = vmatpush1.msra.mxu0 0.0
  %71 = vmatprep.subr.mxu0 0.0
  %72 = vmatpush1.msra.mxu0 0.0
  %73 = vmatprep.subr.mxu0 0.0
  %74 = vmatpush1.msra.mxu0 0.0
  %75 = vmatprep.subr.mxu0 0.0
  %76 = vmatpush1.msra.mxu0 0.0
  %77 = vmatprep.subr.mxu0 0.0
  %78 = vmatpush1.msra.mxu0 0.0
  %79 = vmatprep.subr.mxu0 0.0
  %80 = vmatpush1.msra.mxu0 0.0
  %81 = vmatprep.subr.mxu0 0.0
  %82 = vmatpush1.msra.mxu0 0.0
  %83 = vmatprep.subr.mxu0 0.0
  %84 = vmatpush1.msra.mxu0 0.0
  %85 = vmatprep.subr.mxu0 0.0
  %86 = vmatpush1.msra.mxu0 0.0
  %87 = vmatprep.subr.mxu0 0.0
  %88 = vmatpush1.msra.mxu0 0.0
  %89 = vmatprep.subr.mxu0 0.0
  %90 = vmatpush1.msra.mxu0 0.0
  %91 = vmatprep.subr.mxu0 0.0
  %92 = vmatpush1.msra.mxu0 0.0
  %93 = vmatprep.subr.mxu0 0.0
  %94 = vmatpush1.msra.mxu0 0.0
  %95 = vmatprep.subr.mxu0 0.0
  %96 = vmatpush1.msra.mxu0 0.0
  %97 = vmatprep.subr.mxu0 0.0
  %98 = vmatpush1.msra.mxu0 0.0
  %99 = vmatprep.subr.mxu0 0.0
  %100 = vmatpush1.msra.mxu0 0.0
  %101 = vmatprep.subr.mxu0 0.0
  %102 = vmatpush1.msra.mxu0 0.0
  %103 = vmatprep.subr.mxu0 0.0
  %104 = vmatpush1.msra.mxu0 0.0
  %105 = vmatprep.subr.mxu0 0.0
  %106 = vmatpush1.msra.mxu0 0.0
  %107 = vmatprep.subr.mxu0 0.0
  %108 = vmatpush1.msra.mxu0 0.0
  %109 = vmatprep.subr.mxu0 0.0
  %110 = vmatpush1.msra.mxu0 0.0
  %111 = vmatprep.subr.mxu0 0.0
  %112 = vmatpush1.msra.mxu0 0.0
  %113 = vmatprep.subr.mxu0 0.0
  %114 = vmatpush1.msra.mxu0 0.0
  %115 = vmatprep.subr.mxu0 0.0
  %116 = vmatpush1.msra.mxu0 0.0
  %117 = vmatprep.subr.mxu0 0.0
  %118 = vmatpush1.msra.mxu0 0.0
  %119 = vmatprep.subr.mxu0 0.0
  %120 = vmatpush1.msra.mxu0 0.0
  %121 = vmatprep.mubr.f32.mxu0 0.0
  %122 = vmatmul.mubr.f32.gmra.mrb[0].mxu0 %v51
  %v123 = vpop.f32.mrb[0].mxu0
  %v124 = vadd.f32 0.0, %v123
  %v125 = vpop.f32.mrb[0].mxu0
  %126 = vdwg.mxu0
  %v127 = vld [vmem:[%s2] sm:$0xff]
  %v128 = vld [vmem:[%s2 + $0x8] sm:$0xff]
  %v129 = vld [vmem:[%s2 + $0x10] sm:$0xff]
  %v130 = vld [vmem:[%s2 + $0x18] sm:$0x3f]
  %vm131 = vcmask 244736
  %v133 = vsel %vm131, %v45, 0
  %vm135 = vcmask 1045504
  %v137 = vsel %vm135, %v130, 0
  %139 = vmatprep.subr.mxu0 0.0
  %140 = vmatpush1.msra.mxu0 %v127
  %141 = vmatprep.subr.mxu0 0.0
  %142 = vmatpush1.msra.mxu0 %v128
  %143 = vmatprep.subr.mxu0 0.0
  %144 = vmatpush1.msra.mxu0 %v129
  %145 = vmatprep.subr.mxu0 0.0
  %146 = vmatpush1.msra.mxu0 %v137
  %147 = vmatprep.subr.mxu0 0.0
  %148 = vmatpush1.msra.mxu0 0.0
  %149 = vmatprep.subr.mxu0 0.0
  %150 = vmatpush1.msra.mxu0 0.0
  %151 = vmatprep.subr.mxu0 0.0
  %152 = vmatpush1.msra.mxu0 0.0
  %153 = vmatprep.subr.mxu0 0.0
  %154 = vmatpush1.msra.mxu0 0.0
  %155 = vmatprep.subr.mxu0 0.0
  %156 = vmatpush1.msra.mxu0 0.0
  %157 = vmatprep.subr.mxu0 0.0
  %158 = vmatpush1.msra.mxu0 0.0
  %159 = vmatprep.subr.mxu0 0.0
  %160 = vmatpush1.msra.mxu0 0.0
  %161 = vmatprep.subr.mxu0 0.0
  %162 = vmatpush1.msra.mxu0 0.0
  %163 = vmatprep.subr.mxu0 0.0
  %164 = vmatpush1.msra.mxu0 0.0
  %165 = vmatprep.subr.mxu0 0.0
  %166 = vmatpush1.msra.mxu0 0.0
  %167 = vmatprep.subr.mxu0 0.0
  %168 = vmatpush1.msra.mxu0 0.0
  %169 = vmatprep.subr.mxu0 0.0
  %170 = vmatpush1.msra.mxu0 0.0
  %171 = vmatprep.subr.mxu0 0.0
  %172 = vmatpush1.msra.mxu0 0.0
  %173 = vmatprep.subr.mxu0 0.0
  %174 = vmatpush1.msra.mxu0 0.0
  %175 = vmatprep.subr.mxu0 0.0
  %176 = vmatpush1.msra.mxu0 0.0
  %177 = vmatprep.subr.mxu0 0.0
  %178 = vmatpush1.msra.mxu0 0.0
  %179 = vmatprep.subr.mxu0 0.0
  %180 = vmatpush1.msra.mxu0 0.0
  %181 = vmatprep.subr.mxu0 0.0
  %182 = vmatpush1.msra.mxu0 0.0
  %183 = vmatprep.subr.mxu0 0.0
  %184 = vmatpush1.msra.mxu0 0.0
  %185 = vmatprep.subr.mxu0 0.0
  %186 = vmatpush1.msra.mxu0 0.0
  %187 = vmatprep.subr.mxu0 0.0
  %188 = vmatpush1.msra.mxu0 0.0
  %189 = vmatprep.subr.mxu0 0.0
  %190 = vmatpush1.msra.mxu0 0.0
  %191 = vmatprep.subr.mxu0 0.0
  %192 = vmatpush1.msra.mxu0 0.0
  %193 = vmatprep.subr.mxu0 0.0
  %194 = vmatpush1.msra.mxu0 0.0
  %195 = vmatprep.subr.mxu0 0.0
  %196 = vmatpush1.msra.mxu0 0.0
  %197 = vmatprep.subr.mxu0 0.0
  %198 = vmatpush1.msra.mxu0 0.0
  %199 = vmatprep.subr.mxu0 0.0
  %200 = vmatpush1.msra.mxu0 0.0
  %201 = vmatprep.subr.mxu0 0.0
  %202 = vmatpush1.msra.mxu0 0.0
  %203 = vmatprep.mubr.f32.mxu0 0.0
  %204 = vmatmul.mubr.f32.gmra.mrb[0].mxu0 %v133
  %v205 = vpop.f32.mrb[0].mxu0
  %v206 = vadd.f32 0.0, %v205
  %v207 = vpop.f32.mrb[0].mxu0
  %208 = vdwg.mxu0
  %v209 = vadd.f32 %v124, %v206
  %v210 = vld [vmem:[%s3] sm:$0x1]
  %v212 = vlaneseq
  %v213 = vshrl.u32 %v212, 7
  %v214 = vsub.s32 0, %v213
  %v215 = vrot.slane %v210, %v214
  %v217 = vadd.f32 %v209, %v215
  %v218 = vmax.f32 %v217, 0.0
  %v219 = vld [vmem:[%s4] sm:$0xff]
  %v220 = vld [vmem:[%s4 + $0x8] sm:$0xff]
  %v221 = vld [vmem:[%s4 + $0x10] sm:$0xff]
  %v222 = vld [vmem:[%s4 + $0x18] sm:$0xff]
  %v223 = vld [vmem:[%s5] sm:$0x1]
  %v225 = vlaneseq
  %v226 = vshrl.u32 %v225, 7
  %v227 = vsub.s32 0, %v226
  %v228 = vrot.slane %v223, %v227
  %vm230 = vcmask 261120
  %v232 = vsel %vm230, %v218, 0
  %234 = vmatprep.subr.mxu0 0.0
  %235 = vmatpush1.msra.mxu0 %v219
  %236 = vmatprep.subr.mxu0 0.0
  %237 = vmatpush1.msra.mxu0 %v220
  %238 = vmatprep.subr.mxu0 0.0
  %239 = vmatpush1.msra.mxu0 %v221
  %240 = vmatprep.subr.mxu0 0.0
  %241 = vmatpush1.msra.mxu0 %v222
  %242 = vmatprep.subr.mxu0 0.0
  %243 = vmatpush1.msra.mxu0 0.0
  %244 = vmatprep.subr.mxu0 0.0
  %245 = vmatpush1.msra.mxu0 0.0
  %246 = vmatprep.subr.mxu0 0.0
  %247 = vmatpush1.msra.mxu0 0.0
  %248 = vmatprep.subr.mxu0 0.0
  %249 = vmatpush1.msra.mxu0 0.0
  %250 = vmatprep.subr.mxu0 0.0
  %251 = vmatpush1.msra.mxu0 0.0
  %252 = vmatprep.subr.mxu0 0.0
  %253 = vmatpush1.msra.mxu0 0.0
  %254 = vmatprep.subr.mxu0 0.0
  %255 = vmatpush1.msra.mxu0 0.0
  %256 = vmatprep.subr.mxu0 0.0
  %257 = vmatpush1.msra.mxu0 0.0
  %258 = vmatprep.subr.mxu0 0.0
  %259 = vmatpush1.msra.mxu0 0.0
  %260 = vmatprep.subr.mxu0 0.0
  %261 = vmatpush1.msra.mxu0 0.0
  %262 = vmatprep.subr.mxu0 0.0
  %263 = vmatpush1.msra.mxu0 0.0
  %264 = vmatprep.subr.mxu0 0.0
  %265 = vmatpush1.msra.mxu0 0.0
  %266 = vmatprep.subr.mxu0 0.0
  %267 = vmatpush1.msra.mxu0 0.0
  %268 = vmatprep.subr.mxu0 0.0
  %269 = vmatpush1.msra.mxu0 0.0
  %270 = vmatprep.subr.mxu0 0.0
  %271 = vmatpush1.msra.mxu0 0.0
  %272 = vmatprep.subr.mxu0 0.0
  %273 = vmatpush1.msra.mxu0 0.0
  %274 = vmatprep.subr.mxu0 0.0
  %275 = vmatpush1.msra.mxu0 0.0
  %276 = vmatprep.subr.mxu0 0.0
  %277 = vmatpush1.msra.mxu0 0.0
  %278 = vmatprep.subr.mxu0 0.0
  %279 = vmatpush1.msra.mxu0 0.0
  %280 = vmatprep.subr.mxu0 0.0
  %281 = vmatpush1.msra.mxu0 0.0
  %282 = vmatprep.subr.mxu0 0.0
  %283 = vmatpush1.msra.mxu0 0.0
  %284 = vmatprep.subr.mxu0 0.0
  %285 = vmatpush1.msra.mxu0 0.0
  %286 = vmatprep.subr.mxu0 0.0
  %287 = vmatpush1.msra.mxu0 0.0
  %288 = vmatprep.subr.mxu0 0.0
  %289 = vmatpush1.msra.mxu0 0.0
  %290 = vmatprep.subr.mxu0 0.0
  %291 = vmatpush1.msra.mxu0 0.0
  %292 = vmatprep.subr.mxu0 0.0
  %293 = vmatpush1.msra.mxu0 0.0
  %294 = vmatprep.subr.mxu0 0.0
  %295 = vmatpush1.msra.mxu0 0.0
  %296 = vmatprep.subr.mxu0 0.0
  %297 = vmatpush1.msra.mxu0 0.0
  %298 = vmatprep.mubr.f32.mxu0 0.0
  %299 = vmatmul.mubr.f32.gmra.mrb[0].mxu0 %v232
  %v300 = vpop.f32.mrb[0].mxu0
  %v301 = vadd.f32 %v228, %v300
  %v302 = vpop.f32.mrb[0].mxu0
  %303 = vdwg.mxu0
  %v304 = vmax.f32 %v301, 0.0
  %v305 = vmul.f32 %v124, %v206
  %307 = vrot.lane.b32.xlu0 %v305, 96
  %v308 = vpop.permute.xlu0 %307
  %vm310 = vcmask 130048
  %v311 = vsel %vm310, %v308, 0.0
  %312 = vadd.xlane.f32.xlu0 %v311
  %v313 = vpop.xlane.xlu0 %312
  %v314 = vld [vmem:[%s6] sm:$0x1]
  %v316 = vlaneseq
  %v317 = vshrl.u32 %v316, 7
  %v318 = vsub.s32 0, %v317
  %v319 = vrot.slane %v314, %v318
  %v321 = vmul.f32 %v304, %v319
  %v322 = vsel %vm310, %v321, 0.0
  %323 = vadd.xlane.f32.xlu0 %v322
  %v324 = vpop.xlane.xlu0 %323
  %v325 = vadd.f32 %v313, %v324
  %v326 = vld [vmem:[#allocation2] sm:$0x1]
  %v328 = vlaneseq
  %v329 = vshrl.u32 %v328, 7
  %v330 = vsub.s32 0, %v329
  %v331 = vrot.slane %v326, %v330
  %v333 = vadd.f32 %v325, %v331
  %v334 = vxor.u32 %v333, 2147483648
  %v335 = vmul.f32 %v334, 1.442695
  %v336 = vpow.pop %v335
  %v337 = vadd.f32 %v336, 1.0
  %v338 = vrcp.pop %v337
  %v339 = vmul.f32 1.0, %v338
  %vm340 = vcmask 7168
  %341 = vst.msk [vmem:[%s8] sm:$0xff] %vm340, %v339
  // Predicated region
  $region34: #{tpu_custom_call.1} parent=0 // pred_check
    _
  $region35: #{tpu_custom_call.1} parent=0 // pred_check_branch
    %343 = sbr.rel (0) target = $region37
  $region36: #{tpu_custom_call.1} parent=0 // pred_region
    _
  $region37: #{tpu_custom_call.1} parent=0 // pred_fallthru
    _
  // Predicated region
  $region38: #{tpu_custom_call.1} parent=0 // pred_check
    _
  $region39: #{tpu_custom_call.1} parent=0 // pred_check_branch
    %345 = sbr.rel (0) target = $region41
  $region40: #{tpu_custom_call.1} parent=0 // pred_region
    _
  $region41: #{tpu_custom_call.1} parent=0 // pred_fallthru
    _

</llo_original>
